<compile_context>
chip_gen: v5e
topology: v5e:2x2
jax: 0.10.0
libtpu: 0.0.40
codegen_flags: <defaults>
</compile_context>

<pallas_src>
import math
import jax
import jax.numpy as jnp
from jax.experimental import pallas as pl
from jax.experimental.pallas import tpu as pltpu


def make_mha_kernel(num_heads: int, att_dim: int, seq_len: int, batch_tile: int,
                    eps: float = 1e-6):
    H, A, S, BT = num_heads, att_dim, seq_len, batch_tile
    E = H * A

    def kernel(q_ref, k_ref, v_ref, mask_ref,
               wq_ref, wk_ref, wv_ref, wo_ref, bo_ref, gamma_ref, beta_ref,
               o_ref):
        # q_ref: (BT*S, E) f32 (kept f32 for an exact residual)
        # k_ref, v_ref: (BT*S, E) bf16 ; mask_ref: (BT, S, S) int32
        # wq/wk/wv: (E, H*A) bf16 fused head weights (scale folded into WQ)
        # wo: (E, E) bf16 ; bo/gamma/beta: (1, E) f32 ; o_ref: (BT*S, E) f32
        q_all = q_ref[...]                                               # f32

        # Fused head projections: one bf16 MXU matmul per Q/K/V, f32 accumulation.
        qh = jnp.dot(q_all.astype(jnp.bfloat16), wq_ref[...],
                     preferred_element_type=jnp.float32)                 # (BT*S, H*A)
        kh = jnp.dot(k_ref[...], wk_ref[...],
                     preferred_element_type=jnp.float32)                 # (BT*S, H*A)
        vh = jnp.dot(v_ref[...], wv_ref[...],
                     preferred_element_type=jnp.float32)                 # (BT*S, H*A)

        wo = wo_ref[...]                                                 # (E, E) bf16
        bo = bo_ref[...]                                                 # (1, E) f32
        gamma = gamma_ref[...]
        beta = beta_ref[...]

        for b in range(BT):               # static unroll; BT is small
            r0 = b * S
            # masked_fill(mask == 0, -1e20) as an additive bias, built ONCE per batch
            bias = jnp.where(mask_ref[b] == 0,
                             jnp.float32(-1e20), jnp.float32(0.0))       # (S, S)
            # TODO(synk): causal (tril) branch of Attention not emitted since mask=False here.

            acc = jnp.zeros((S, E), jnp.float32)
            for h in range(H):
                c0 = h * A
                qs = qh[r0:r0 + S, c0:c0 + A].astype(jnp.bfloat16)       # (S, A)
                ks = kh[r0:r0 + S, c0:c0 + A].astype(jnp.bfloat16)       # (S, A)
                vs = vh[r0:r0 + S, c0:c0 + A].astype(jnp.bfloat16)       # (S, A)

                # scores (scale already folded into WQ), f32 accumulation
                s = jnp.dot(qs, ks.T, preferred_element_type=jnp.float32) + bias  # (S, S)
                s = s - jnp.max(s, axis=-1, keepdims=True)
                p = jnp.exp(s)
                p = p * pl.reciprocal(jnp.sum(p, axis=-1, keepdims=True), approx=True)

                pv = jnp.dot(p.astype(jnp.bfloat16), vs,
                             preferred_element_type=jnp.float32)         # (S, A)
                # concat-free output projection: sum_h pv_h @ WO[h*A:(h+1)*A, :]
                acc = acc + jnp.dot(pv.astype(jnp.bfloat16), wo[c0:c0 + A, :],
                                    preferred_element_type=jnp.float32)  # (S, E)

            # dropout(p=0) is identity; post_LN=True -> LN(out + residual), all in f32
            x = acc + bo + q_all[r0:r0 + S, :]
            mu = jnp.mean(x, axis=-1, keepdims=True)
            var = jnp.mean((x - mu) * (x - mu), axis=-1, keepdims=True)
            y = (x - mu) * jax.lax.rsqrt(var + eps)
            o_ref[r0:r0 + S, :] = y * gamma + beta

    return kernel


def multi_head_att(q, k, v, mask_pad, params, *, batch_tile=None, eps=1e-6):
    """q, k, v: (B, S, E) f32; mask_pad: (B, S, S) (0 = masked position)."""
    B, S, E = q.shape
    wq, wk, wv = params["wq"], params["wk"], params["wv"]     # (H, E, A)
    H, _, A = wq.shape
    assert H * A == E

    BT = B if batch_tile is None else batch_tile              # batches per grid step
    assert B % BT == 0

    # Host-side weight prep (one-time layout plumbing):
    #   fuse per-head (E, A) weights into (E, H*A); fold 1/sqrt(A) into WQ; cast to bf16.
    scale = 1.0 / math.sqrt(A)
    wq_f = (jnp.transpose(wq, (1, 0, 2)).reshape(E, H * A) * scale).astype(jnp.bfloat16)
    wk_f = jnp.transpose(wk, (1, 0, 2)).reshape(E, H * A).astype(jnp.bfloat16)
    wv_f = jnp.transpose(wv, (1, 0, 2)).reshape(E, H * A).astype(jnp.bfloat16)
    wo_b = params["wo"].astype(jnp.bfloat16)                  # (E, E)
    bo, gamma, beta = params["bo"], params["gamma"], params["beta"]

    # Flatten activations to 2D so the projections are single lane/sublane-friendly matmuls.
    q2 = q.reshape(B * S, E)                                  # f32 (exact residual)
    k2 = k.reshape(B * S, E).astype(jnp.bfloat16)
    v2 = v.reshape(B * S, E).astype(jnp.bfloat16)
    mask = mask_pad.astype(jnp.int32)
    # TODO(synk): for long sequences pass per-batch key lengths instead of a (B,S,S) mask.

    kernel = make_mha_kernel(H, A, S, BT, eps)

    rows = lambda i: (i, 0)
    full2 = lambda i: (0, 0)

    out2 = pl.pallas_call(
        kernel,
        out_shape=jax.ShapeDtypeStruct((B * S, E), jnp.float32),
        grid=(B // BT,),
        in_specs=[
            pl.BlockSpec((BT * S, E), rows),                  # q  (f32)
            pl.BlockSpec((BT * S, E), rows),                  # k  (bf16)
            pl.BlockSpec((BT * S, E), rows),                  # v  (bf16)
            pl.BlockSpec((BT, S, S), lambda i: (i, 0, 0)),    # mask_pad
            pl.BlockSpec((E, H * A), full2),                  # fused WQ (pre-scaled)
            pl.BlockSpec((E, H * A), full2),                  # fused WK
            pl.BlockSpec((E, H * A), full2),                  # fused WV
            pl.BlockSpec((E, E), full2),                      # WO
            pl.BlockSpec((1, E), full2),                      # bo
            pl.BlockSpec((1, E), full2),                      # gamma
            pl.BlockSpec((1, E), full2),                      # beta
        ],
        out_specs=pl.BlockSpec((BT * S, E), rows),
        compiler_params=pltpu.CompilerParams(
            dimension_semantics=("parallel",)),
    )(q2, k2, v2, mask, wq_f, wk_f, wv_f, wo_b, bo, gamma, beta)

    return out2.reshape(B, S, E)


def reference(q, k, v, mask_pad, params):
    """Pure-JAX f32 reference mirroring the PyTorch forward (head>1, post_LN, mask=False)."""
    wq, wk, wv = params["wq"], params["wk"], params["wv"]
    H, E, A = wq.shape
    res = q
    head_outs = []
    for h in range(H):
        qh = q @ wq[h]
        kh = k @ wk[h]
        vh = v @ wv[h]
        s = jnp.einsum("bqa,bka->bqk", qh, kh) / math.sqrt(A)
        s = jnp.where(mask_pad == 0, -1e20, s)
        p = jax.nn.softmax(s, axis=2)
        head_outs.append(jnp.einsum("bqk,bka->bqa", p, vh))
    out = jnp.concatenate(head_outs, axis=-1) @ params["wo"] + params["bo"][0]
    x = out + res
    mu = jnp.mean(x, axis=-1, keepdims=True)
    var = jnp.mean((x - mu) ** 2, axis=-1, keepdims=True)
    return (x - mu) / jnp.sqrt(var + 1e-6) * params["gamma"][0] + params["beta"][0]


if __name__ == "__main__":
    B, S, E, H = 2, 8, 32, 2
    A = E // H

    key = jax.random.PRNGKey(0)
    ks = jax.random.split(key, 10)

    q = jax.random.normal(ks[0], (B, S, E), jnp.float32)
    k = jax.random.normal(ks[1], (B, S, E), jnp.float32)
    v = jax.random.normal(ks[2], (B, S, E), jnp.float32)

    # padding mask: last 2 key positions of batch 1 are padded; broadcast over query rows
    mask_pad = jnp.ones((B, S, S), jnp.int32)
    mask_pad = mask_pad.at[1, :, S - 2:].set(0)

    scale_init = 1.0 / math.sqrt(E)
    params = {
        "wq": jax.random.uniform(ks[3], (H, E, A), jnp.float32, -scale_init, scale_init),
        "wk": jax.random.uniform(ks[4], (H, E, A), jnp.float32, -scale_init, scale_init),
        "wv": jax.random.uniform(ks[5], (H, E, A), jnp.float32, -scale_init, scale_init),
        "wo": jax.random.uniform(ks[6], (E, E), jnp.float32, -scale_init, scale_init),
        "bo": jax.random.uniform(ks[7], (1, E), jnp.float32, -scale_init, scale_init),
        "gamma": jnp.ones((1, E), jnp.float32) + 0.1 * jax.random.normal(ks[8], (1, E)),
        "beta": 0.1 * jax.random.normal(ks[9], (1, E)),
    }

    out = multi_head_att(q, k, v, mask_pad, params)
    out = jax.block_until_ready(out)

    ref = reference(q, k, v, mask_pad, params)
    assert out.shape == (B, S, E)
    # bf16 MXU operands + approx softmax reciprocal -> relaxed tolerance vs the f32 reference
    max_err = float(jnp.max(jnp.abs(out - ref)))
    assert jnp.allclose(out, ref, atol=2e-2, rtol=2e-2), f"mismatch vs reference (max abs err {max_err})"

    print("KERNEL_OK")
</pallas_src>

<mosaic_0001>
module attributes {stable_mosaic.version = 11 : i64} {
  func.func @kernel(%arg0: i32, %arg1: memref<16x32xf32, #tpu.memory_space<vmem>>, %arg2: memref<16x32xbf16, #tpu.memory_space<vmem>>, %arg3: memref<16x32xbf16, #tpu.memory_space<vmem>>, %arg4: memref<2x8x8xi32, #tpu.memory_space<vmem>>, %arg5: memref<32x32xbf16, #tpu.memory_space<vmem>>, %arg6: memref<32x32xbf16, #tpu.memory_space<vmem>>, %arg7: memref<32x32xbf16, #tpu.memory_space<vmem>>, %arg8: memref<32x32xbf16, #tpu.memory_space<vmem>>, %arg9: memref<1x32xf32, #tpu.memory_space<vmem>>, %arg10: memref<1x32xf32, #tpu.memory_space<vmem>>, %arg11: memref<1x32xf32, #tpu.memory_space<vmem>>, %arg12: memref<16x32xf32, #tpu.memory_space<vmem>>) attributes {dimension_semantics = [#tpu.dimension_semantics<parallel>], iteration_bounds = array<i64: 1>, scalar_prefetch = 0 : i64, scratch_operands = 0 : i64, tpu.core_type = #tpu.core_type<tc>, window_params = [{transform_indices = @transform_0, window_bounds = array<i64: 16, 32>}, {transform_indices = @transform_1, window_bounds = array<i64: 16, 32>}, {transform_indices = @transform_2, window_bounds = array<i64: 16, 32>}, {transform_indices = @transform_3, window_bounds = array<i64: 2, 8, 8>}, {pipeline_mode = #tpu.pipeline_mode<synchronous>, transform_indices = @transform_4, window_bounds = array<i64: 32, 32>}, {pipeline_mode = #tpu.pipeline_mode<synchronous>, transform_indices = @transform_5, window_bounds = array<i64: 32, 32>}, {pipeline_mode = #tpu.pipeline_mode<synchronous>, transform_indices = @transform_6, window_bounds = array<i64: 32, 32>}, {pipeline_mode = #tpu.pipeline_mode<synchronous>, transform_indices = @transform_7, window_bounds = array<i64: 32, 32>}, {pipeline_mode = #tpu.pipeline_mode<synchronous>, transform_indices = @transform_8, window_bounds = array<i64: 1, 32>}, {pipeline_mode = #tpu.pipeline_mode<synchronous>, transform_indices = @transform_9, window_bounds = array<i64: 1, 32>}, {pipeline_mode = #tpu.pipeline_mode<synchronous>, transform_indices = @transform_10, window_bounds = array<i64: 1, 32>}, {transform_indices = @transform_11, window_bounds = array<i64: 16, 32>}]} {
    %c0 = arith.constant 0 : index
    %c0_0 = arith.constant 0 : index
    %0 = vector.load %arg1[%c0, %c0_0] : memref<16x32xf32, #tpu.memory_space<vmem>>, vector<16x32xf32>
    %1 = arith.truncf %0 : vector<16x32xf32> to vector<16x32xbf16>
    %c0_1 = arith.constant 0 : index
    %c0_2 = arith.constant 0 : index
    %2 = vector.load %arg5[%c0_1, %c0_2] : memref<32x32xbf16, #tpu.memory_space<vmem>>, vector<32x32xbf16>
    %cst = arith.constant dense<0.000000e+00> : vector<16x32xf32>
    %3 = tpu.matmul %1, %2, %cst {dimension_numbers = #tpu.dot_dimension_numbers<[1], [0], [0], [1], [0, 0, 1, 1], [], []>} : vector<16x32xbf16>, vector<32x32xbf16>, vector<16x32xf32> -> vector<16x32xf32>
    %c0_3 = arith.constant 0 : index
    %c0_4 = arith.constant 0 : index
    %4 = vector.load %arg2[%c0_3, %c0_4] : memref<16x32xbf16, #tpu.memory_space<vmem>>, vector<16x32xbf16>
    %c0_5 = arith.constant 0 : index
    %c0_6 = arith.constant 0 : index
    %5 = vector.load %arg6[%c0_5, %c0_6] : memref<32x32xbf16, #tpu.memory_space<vmem>>, vector<32x32xbf16>
    %cst_7 = arith.constant dense<0.000000e+00> : vector<16x32xf32>
    %6 = tpu.matmul %4, %5, %cst_7 {dimension_numbers = #tpu.dot_dimension_numbers<[1], [0], [0], [1], [0, 0, 1, 1], [], []>} : vector<16x32xbf16>, vector<32x32xbf16>, vector<16x32xf32> -> vector<16x32xf32>
    %c0_8 = arith.constant 0 : index
    %c0_9 = arith.constant 0 : index
    %7 = vector.load %arg3[%c0_8, %c0_9] : memref<16x32xbf16, #tpu.memory_space<vmem>>, vector<16x32xbf16>
    %c0_10 = arith.constant 0 : index
    %c0_11 = arith.constant 0 : index
    %8 = vector.load %arg7[%c0_10, %c0_11] : memref<32x32xbf16, #tpu.memory_space<vmem>>, vector<32x32xbf16>
    %cst_12 = arith.constant dense<0.000000e+00> : vector<16x32xf32>
    %9 = tpu.matmul %7, %8, %cst_12 {dimension_numbers = #tpu.dot_dimension_numbers<[1], [0], [0], [1], [0, 0, 1, 1], [], []>} : vector<16x32xbf16>, vector<32x32xbf16>, vector<16x32xf32> -> vector<16x32xf32>
    %c0_13 = arith.constant 0 : index
    %c0_14 = arith.constant 0 : index
    %10 = vector.load %arg8[%c0_13, %c0_14] : memref<32x32xbf16, #tpu.memory_space<vmem>>, vector<32x32xbf16>
    %c0_15 = arith.constant 0 : index
    %c0_16 = arith.constant 0 : index
    %11 = vector.load %arg9[%c0_15, %c0_16] : memref<1x32xf32, #tpu.memory_space<vmem>>, vector<1x32xf32>
    %c0_17 = arith.constant 0 : index
    %c0_18 = arith.constant 0 : index
    %12 = vector.load %arg10[%c0_17, %c0_18] : memref<1x32xf32, #tpu.memory_space<vmem>>, vector<1x32xf32>
    %c0_19 = arith.constant 0 : index
    %c0_20 = arith.constant 0 : index
    %13 = vector.load %arg11[%c0_19, %c0_20] : memref<1x32xf32, #tpu.memory_space<vmem>>, vector<1x32xf32>
    %c0_21 = arith.constant 0 : index
    %c0_22 = arith.constant 0 : index
    %c0_23 = arith.constant 0 : index
    %14 = vector.load %arg4[%c0_21, %c0_22, %c0_23] : memref<2x8x8xi32, #tpu.memory_space<vmem>>, vector<1x8x8xi32>
    %15 = vector.shape_cast %14 : vector<1x8x8xi32> to vector<8x8xi32>
    %c0_i32 = arith.constant 0 : i32
    %16 = vector.broadcast %c0_i32 : i32 to vector<8x8xi32>
    %17 = arith.cmpi eq, %15, %16 : vector<8x8xi32>
    %cst_24 = arith.constant -1.000000e+20 : f32
    %cst_25 = arith.constant 0.000000e+00 : f32
    %18 = vector.broadcast %cst_24 : f32 to vector<8x8xf32>
    %19 = vector.broadcast %cst_25 : f32 to vector<8x8xf32>
    %20 = arith.select %17, %18, %19 : vector<8x8xi1>, vector<8x8xf32>
    %cst_26 = arith.constant 0.000000e+00 : f32
    %21 = vector.broadcast %cst_26 : f32 to vector<8x32xf32>
    %22 = vector.extract_strided_slice %3 {offsets = [0, 0], sizes = [8, 16], strides = [1, 1]} : vector<16x32xf32> to vector<8x16xf32>
    %23 = arith.truncf %22 : vector<8x16xf32> to vector<8x16xbf16>
    %24 = vector.extract_strided_slice %6 {offsets = [0, 0], sizes = [8, 16], strides = [1, 1]} : vector<16x32xf32> to vector<8x16xf32>
    %25 = arith.truncf %24 : vector<8x16xf32> to vector<8x16xbf16>
    %26 = vector.extract_strided_slice %9 {offsets = [0, 0], sizes = [8, 16], strides = [1, 1]} : vector<16x32xf32> to vector<8x16xf32>
    %27 = arith.truncf %26 : vector<8x16xf32> to vector<8x16xbf16>
    %28 = tpu.transpose %25, [1, 0] : vector<8x16xbf16> -> vector<16x8xbf16>
    %cst_27 = arith.constant dense<0.000000e+00> : vector<8x8xf32>
    %29 = tpu.matmul %23, %28, %cst_27 {dimension_numbers = #tpu.dot_dimension_numbers<[1], [0], [0], [1], [0, 0, 1, 1], [], []>} : vector<8x16xbf16>, vector<16x8xbf16>, vector<8x8xf32> -> vector<8x8xf32>
    %30 = arith.addf %29, %20 : vector<8x8xf32>
    %cst_28 = arith.constant dense<0xFF800000> : vector<8xf32>
    %31 = vector.multi_reduction <maximumf>, %30, %cst_28 [1] : vector<8x8xf32> to vector<8xf32>
    %32 = vector.shape_cast %31 : vector<8xf32> to vector<8x1xf32>
    %33 = vector.broadcast %32 : vector<8x1xf32> to vector<8x8xf32>
    %34 = arith.subf %30, %33 : vector<8x8xf32>
    %35 = math.exp %34 : vector<8x8xf32>
    %cst_29 = arith.constant dense<0.000000e+00> : vector<8xf32>
    %36 = vector.multi_reduction <add>, %35, %cst_29 [1] : vector<8x8xf32> to vector<8xf32>
    %37 = vector.shape_cast %36 : vector<8xf32> to vector<8x1xf32>
    %38 = tpu.reciprocal %37 {approx = true} : vector<8x1xf32> -> vector<8x1xf32>
    %39 = vector.broadcast %38 : vector<8x1xf32> to vector<8x8xf32>
    %40 = arith.mulf %35, %39 : vector<8x8xf32>
    %41 = arith.truncf %40 : vector<8x8xf32> to vector<8x8xbf16>
    %cst_30 = arith.constant dense<0.000000e+00> : vector<8x16xf32>
    %42 = tpu.matmul %41, %27, %cst_30 {dimension_numbers = #tpu.dot_dimension_numbers<[1], [0], [0], [1], [0, 0, 1, 1], [], []>} : vector<8x8xbf16>, vector<8x16xbf16>, vector<8x16xf32> -> vector<8x16xf32>
    %43 = arith.truncf %42 : vector<8x16xf32> to vector<8x16xbf16>
    %44 = vector.extract_strided_slice %10 {offsets = [0, 0], sizes = [16, 32], strides = [1, 1]} : vector<32x32xbf16> to vector<16x32xbf16>
    %cst_31 = arith.constant dense<0.000000e+00> : vector<8x32xf32>
    %45 = tpu.matmul %43, %44, %cst_31 {dimension_numbers = #tpu.dot_dimension_numbers<[1], [0], [0], [1], [0, 0, 1, 1], [], []>} : vector<8x16xbf16>, vector<16x32xbf16>, vector<8x32xf32> -> vector<8x32xf32>
    %46 = arith.addf %21, %45 : vector<8x32xf32>
    %47 = vector.extract_strided_slice %3 {offsets = [0, 16], sizes = [8, 16], strides = [1, 1]} : vector<16x32xf32> to vector<8x16xf32>
    %48 = arith.truncf %47 : vector<8x16xf32> to vector<8x16xbf16>
    %49 = vector.extract_strided_slice %6 {offsets = [0, 16], sizes = [8, 16], strides = [1, 1]} : vector<16x32xf32> to vector<8x16xf32>
    %50 = arith.truncf %49 : vector<8x16xf32> to vector<8x16xbf16>
    %51 = vector.extract_strided_slice %9 {offsets = [0, 16], sizes = [8, 16], strides = [1, 1]} : vector<16x32xf32> to vector<8x16xf32>
    %52 = arith.truncf %51 : vector<8x16xf32> to vector<8x16xbf16>
    %53 = tpu.transpose %50, [1, 0] : vector<8x16xbf16> -> vector<16x8xbf16>
    %cst_32 = arith.constant dense<0.000000e+00> : vector<8x8xf32>
    %54 = tpu.matmul %48, %53, %cst_32 {dimension_numbers = #tpu.dot_dimension_numbers<[1], [0], [0], [1], [0, 0, 1, 1], [], []>} : vector<8x16xbf16>, vector<16x8xbf16>, vector<8x8xf32> -> vector<8x8xf32>
    %55 = arith.addf %54, %20 : vector<8x8xf32>
    %cst_33 = arith.constant dense<0xFF800000> : vector<8xf32>
    %56 = vector.multi_reduction <maximumf>, %55, %cst_33 [1] : vector<8x8xf32> to vector<8xf32>
    %57 = vector.shape_cast %56 : vector<8xf32> to vector<8x1xf32>
    %58 = vector.broadcast %57 : vector<8x1xf32> to vector<8x8xf32>
    %59 = arith.subf %55, %58 : vector<8x8xf32>
    %60 = math.exp %59 : vector<8x8xf32>
    %cst_34 = arith.constant dense<0.000000e+00> : vector<8xf32>
    %61 = vector.multi_reduction <add>, %60, %cst_34 [1] : vector<8x8xf32> to vector<8xf32>
    %62 = vector.shape_cast %61 : vector<8xf32> to vector<8x1xf32>
    %63 = tpu.reciprocal %62 {approx = true} : vector<8x1xf32> -> vector<8x1xf32>
    %64 = vector.broadcast %63 : vector<8x1xf32> to vector<8x8xf32>
    %65 = arith.mulf %60, %64 : vector<8x8xf32>
    %66 = arith.truncf %65 : vector<8x8xf32> to vector<8x8xbf16>
    %cst_35 = arith.constant dense<0.000000e+00> : vector<8x16xf32>
    %67 = tpu.matmul %66, %52, %cst_35 {dimension_numbers = #tpu.dot_dimension_numbers<[1], [0], [0], [1], [0, 0, 1, 1], [], []>} : vector<8x8xbf16>, vector<8x16xbf16>, vector<8x16xf32> -> vector<8x16xf32>
    %68 = arith.truncf %67 : vector<8x16xf32> to vector<8x16xbf16>
    %69 = vector.extract_strided_slice %10 {offsets = [16, 0], sizes = [16, 32], strides = [1, 1]} : vector<32x32xbf16> to vector<16x32xbf16>
    %cst_36 = arith.constant dense<0.000000e+00> : vector<8x32xf32>
    %70 = tpu.matmul %68, %69, %cst_36 {dimension_numbers = #tpu.dot_dimension_numbers<[1], [0], [0], [1], [0, 0, 1, 1], [], []>} : vector<8x16xbf16>, vector<16x32xbf16>, vector<8x32xf32> -> vector<8x32xf32>
    %71 = arith.addf %46, %70 : vector<8x32xf32>
    %72 = vector.broadcast %11 : vector<1x32xf32> to vector<8x32xf32>
    %73 = arith.addf %71, %72 : vector<8x32xf32>
    %74 = vector.extract_strided_slice %0 {offsets = [0, 0], sizes = [8, 32], strides = [1, 1]} : vector<16x32xf32> to vector<8x32xf32>
    %75 = arith.addf %73, %74 : vector<8x32xf32>
    %cst_37 = arith.constant dense<0.000000e+00> : vector<8xf32>
    %76 = vector.multi_reduction <add>, %75, %cst_37 [1] : vector<8x32xf32> to vector<8xf32>
    %77 = vector.shape_cast %76 : vector<8xf32> to vector<8x1xf32>
    %cst_38 = arith.constant 3.200000e+01 : f32
    %78 = vector.broadcast %cst_38 : f32 to vector<8x1xf32>
    %79 = arith.divf %77, %78 : vector<8x1xf32>
    %80 = vector.broadcast %79 : vector<8x1xf32> to vector<8x32xf32>
    %81 = arith.subf %75, %80 : vector<8x32xf32>
    %82 = vector.broadcast %79 : vector<8x1xf32> to vector<8x32xf32>
    %83 = arith.subf %75, %82 : vector<8x32xf32>
    %84 = arith.mulf %81, %83 : vector<8x32xf32>
    %cst_39 = arith.constant dense<0.000000e+00> : vector<8xf32>
    %85 = vector.multi_reduction <add>, %84, %cst_39 [1] : vector<8x32xf32> to vector<8xf32>
    %86 = vector.shape_cast %85 : vector<8xf32> to vector<8x1xf32>
    %cst_40 = arith.constant 3.200000e+01 : f32
    %87 = vector.broadcast %cst_40 : f32 to vector<8x1xf32>
    %88 = arith.divf %86, %87 : vector<8x1xf32>
    %89 = vector.broadcast %79 : vector<8x1xf32> to vector<8x32xf32>
    %90 = arith.subf %75, %89 : vector<8x32xf32>
    %cst_41 = arith.constant 9.99999997E-7 : f32
    %91 = vector.broadcast %cst_41 : f32 to vector<8x1xf32>
    %92 = arith.addf %88, %91 : vector<8x1xf32>
    %93 = math.rsqrt %92 : vector<8x1xf32>
    %94 = vector.broadcast %93 : vector<8x1xf32> to vector<8x32xf32>
    %95 = arith.mulf %90, %94 : vector<8x32xf32>
    %96 = vector.broadcast %12 : vector<1x32xf32> to vector<8x32xf32>
    %97 = arith.mulf %95, %96 : vector<8x32xf32>
    %98 = vector.broadcast %13 : vector<1x32xf32> to vector<8x32xf32>
    %99 = arith.addf %97, %98 : vector<8x32xf32>
    %c0_42 = arith.constant 0 : index
    %c0_43 = arith.constant 0 : index
    %100 = vector.load %arg12[%c0_42, %c0_43] : memref<16x32xf32, #tpu.memory_space<vmem>>, vector<8x32xf32>
    tpu.vector_store %arg12[%c0_42, %c0_43], %99 {strides = array<i32>} : memref<16x32xf32, #tpu.memory_space<vmem>>, vector<8x32xf32>,
    %c1 = arith.constant 1 : index
    %c0_44 = arith.constant 0 : index
    %c0_45 = arith.constant 0 : index
    %101 = vector.load %arg4[%c1, %c0_44, %c0_45] : memref<2x8x8xi32, #tpu.memory_space<vmem>>, vector<1x8x8xi32>
    %102 = vector.shape_cast %101 : vector<1x8x8xi32> to vector<8x8xi32>
    %c0_i32_46 = arith.constant 0 : i32
    %103 = vector.broadcast %c0_i32_46 : i32 to vector<8x8xi32>
    %104 = arith.cmpi eq, %102, %103 : vector<8x8xi32>
    %cst_47 = arith.constant -1.000000e+20 : f32
    %cst_48 = arith.constant 0.000000e+00 : f32
    %105 = vector.broadcast %cst_47 : f32 to vector<8x8xf32>
    %106 = vector.broadcast %cst_48 : f32 to vector<8x8xf32>
    %107 = arith.select %104, %105, %106 : vector<8x8xi1>, vector<8x8xf32>
    %cst_49 = arith.constant 0.000000e+00 : f32
    %108 = vector.broadcast %cst_49 : f32 to vector<8x32xf32>
    %109 = vector.extract_strided_slice %3 {offsets = [8, 0], sizes = [8, 16], strides = [1, 1]} : vector<16x32xf32> to vector<8x16xf32>
    %110 = arith.truncf %109 : vector<8x16xf32> to vector<8x16xbf16>
    %111 = vector.extract_strided_slice %6 {offsets = [8, 0], sizes = [8, 16], strides = [1, 1]} : vector<16x32xf32> to vector<8x16xf32>
    %112 = arith.truncf %111 : vector<8x16xf32> to vector<8x16xbf16>
    %113 = vector.extract_strided_slice %9 {offsets = [8, 0], sizes = [8, 16], strides = [1, 1]} : vector<16x32xf32> to vector<8x16xf32>
    %114 = arith.truncf %113 : vector<8x16xf32> to vector<8x16xbf16>
    %115 = tpu.transpose %112, [1, 0] : vector<8x16xbf16> -> vector<16x8xbf16>
    %cst_50 = arith.constant dense<0.000000e+00> : vector<8x8xf32>
    %116 = tpu.matmul %110, %115, %cst_50 {dimension_numbers = #tpu.dot_dimension_numbers<[1], [0], [0], [1], [0, 0, 1, 1], [], []>} : vector<8x16xbf16>, vector<16x8xbf16>, vector<8x8xf32> -> vector<8x8xf32>
    %117 = arith.addf %116, %107 : vector<8x8xf32>
    %cst_51 = arith.constant dense<0xFF800000> : vector<8xf32>
    %118 = vector.multi_reduction <maximumf>, %117, %cst_51 [1] : vector<8x8xf32> to vector<8xf32>
    %119 = vector.shape_cast %118 : vector<8xf32> to vector<8x1xf32>
    %120 = vector.broadcast %119 : vector<8x1xf32> to vector<8x8xf32>
    %121 = arith.subf %117, %120 : vector<8x8xf32>
    %122 = math.exp %121 : vector<8x8xf32>
    %cst_52 = arith.constant dense<0.000000e+00> : vector<8xf32>
    %123 = vector.multi_reduction <add>, %122, %cst_52 [1] : vector<8x8xf32> to vector<8xf32>
    %124 = vector.shape_cast %123 : vector<8xf32> to vector<8x1xf32>
    %125 = tpu.reciprocal %124 {approx = true} : vector<8x1xf32> -> vector<8x1xf32>
    %126 = vector.broadcast %125 : vector<8x1xf32> to vector<8x8xf32>
    %127 = arith.mulf %122, %126 : vector<8x8xf32>
    %128 = arith.truncf %127 : vector<8x8xf32> to vector<8x8xbf16>
    %cst_53 = arith.constant dense<0.000000e+00> : vector<8x16xf32>
    %129 = tpu.matmul %128, %114, %cst_53 {dimension_numbers = #tpu.dot_dimension_numbers<[1], [0], [0], [1], [0, 0, 1, 1], [], []>} : vector<8x8xbf16>, vector<8x16xbf16>, vector<8x16xf32> -> vector<8x16xf32>
    %130 = arith.truncf %129 : vector<8x16xf32> to vector<8x16xbf16>
    %131 = vector.extract_strided_slice %10 {offsets = [0, 0], sizes = [16, 32], strides = [1, 1]} : vector<32x32xbf16> to vector<16x32xbf16>
    %cst_54 = arith.constant dense<0.000000e+00> : vector<8x32xf32>
    %132 = tpu.matmul %130, %131, %cst_54 {dimension_numbers = #tpu.dot_dimension_numbers<[1], [0], [0], [1], [0, 0, 1, 1], [], []>} : vector<8x16xbf16>, vector<16x32xbf16>, vector<8x32xf32> -> vector<8x32xf32>
    %133 = arith.addf %108, %132 : vector<8x32xf32>
    %134 = vector.extract_strided_slice %3 {offsets = [8, 16], sizes = [8, 16], strides = [1, 1]} : vector<16x32xf32> to vector<8x16xf32>
    %135 = arith.truncf %134 : vector<8x16xf32> to vector<8x16xbf16>
    %136 = vector.extract_strided_slice %6 {offsets = [8, 16], sizes = [8, 16], strides = [1, 1]} : vector<16x32xf32> to vector<8x16xf32>
    %137 = arith.truncf %136 : vector<8x16xf32> to vector<8x16xbf16>
    %138 = vector.extract_strided_slice %9 {offsets = [8, 16], sizes = [8, 16], strides = [1, 1]} : vector<16x32xf32> to vector<8x16xf32>
    %139 = arith.truncf %138 : vector<8x16xf32> to vector<8x16xbf16>
    %140 = tpu.transpose %137, [1, 0] : vector<8x16xbf16> -> vector<16x8xbf16>
    %cst_55 = arith.constant dense<0.000000e+00> : vector<8x8xf32>
    %141 = tpu.matmul %135, %140, %cst_55 {dimension_numbers = #tpu.dot_dimension_numbers<[1], [0], [0], [1], [0, 0, 1, 1], [], []>} : vector<8x16xbf16>, vector<16x8xbf16>, vector<8x8xf32> -> vector<8x8xf32>
    %142 = arith.addf %141, %107 : vector<8x8xf32>
    %cst_56 = arith.constant dense<0xFF800000> : vector<8xf32>
    %143 = vector.multi_reduction <maximumf>, %142, %cst_56 [1] : vector<8x8xf32> to vector<8xf32>
    %144 = vector.shape_cast %143 : vector<8xf32> to vector<8x1xf32>
    %145 = vector.broadcast %144 : vector<8x1xf32> to vector<8x8xf32>
    %146 = arith.subf %142, %145 : vector<8x8xf32>
    %147 = math.exp %146 : vector<8x8xf32>
    %cst_57 = arith.constant dense<0.000000e+00> : vector<8xf32>
    %148 = vector.multi_reduction <add>, %147, %cst_57 [1] : vector<8x8xf32> to vector<8xf32>
    %149 = vector.shape_cast %148 : vector<8xf32> to vector<8x1xf32>
    %150 = tpu.reciprocal %149 {approx = true} : vector<8x1xf32> -> vector<8x1xf32>
    %151 = vector.broadcast %150 : vector<8x1xf32> to vector<8x8xf32>
    %152 = arith.mulf %147, %151 : vector<8x8xf32>
    %153 = arith.truncf %152 : vector<8x8xf32> to vector<8x8xbf16>
    %cst_58 = arith.constant dense<0.000000e+00> : vector<8x16xf32>
    %154 = tpu.matmul %153, %139, %cst_58 {dimension_numbers = #tpu.dot_dimension_numbers<[1], [0], [0], [1], [0, 0, 1, 1], [], []>} : vector<8x8xbf16>, vector<8x16xbf16>, vector<8x16xf32> -> vector<8x16xf32>
    %155 = arith.truncf %154 : vector<8x16xf32> to vector<8x16xbf16>
    %156 = vector.extract_strided_slice %10 {offsets = [16, 0], sizes = [16, 32], strides = [1, 1]} : vector<32x32xbf16> to vector<16x32xbf16>
    %cst_59 = arith.constant dense<0.000000e+00> : vector<8x32xf32>
    %157 = tpu.matmul %155, %156, %cst_59 {dimension_numbers = #tpu.dot_dimension_numbers<[1], [0], [0], [1], [0, 0, 1, 1], [], []>} : vector<8x16xbf16>, vector<16x32xbf16>, vector<8x32xf32> -> vector<8x32xf32>
    %158 = arith.addf %133, %157 : vector<8x32xf32>
    %159 = vector.broadcast %11 : vector<1x32xf32> to vector<8x32xf32>
    %160 = arith.addf %158, %159 : vector<8x32xf32>
    %161 = vector.extract_strided_slice %0 {offsets = [8, 0], sizes = [8, 32], strides = [1, 1]} : vector<16x32xf32> to vector<8x32xf32>
    %162 = arith.addf %160, %161 : vector<8x32xf32>
    %cst_60 = arith.constant dense<0.000000e+00> : vector<8xf32>
    %163 = vector.multi_reduction <add>, %162, %cst_60 [1] : vector<8x32xf32> to vector<8xf32>
    %164 = vector.shape_cast %163 : vector<8xf32> to vector<8x1xf32>
    %cst_61 = arith.constant 3.200000e+01 : f32
    %165 = vector.broadcast %cst_61 : f32 to vector<8x1xf32>
    %166 = arith.divf %164, %165 : vector<8x1xf32>
    %167 = vector.broadcast %166 : vector<8x1xf32> to vector<8x32xf32>
    %168 = arith.subf %162, %167 : vector<8x32xf32>
    %169 = vector.broadcast %166 : vector<8x1xf32> to vector<8x32xf32>
    %170 = arith.subf %162, %169 : vector<8x32xf32>
    %171 = arith.mulf %168, %170 : vector<8x32xf32>
    %cst_62 = arith.constant dense<0.000000e+00> : vector<8xf32>
    %172 = vector.multi_reduction <add>, %171, %cst_62 [1] : vector<8x32xf32> to vector<8xf32>
    %173 = vector.shape_cast %172 : vector<8xf32> to vector<8x1xf32>
    %cst_63 = arith.constant 3.200000e+01 : f32
    %174 = vector.broadcast %cst_63 : f32 to vector<8x1xf32>
    %175 = arith.divf %173, %174 : vector<8x1xf32>
    %176 = vector.broadcast %166 : vector<8x1xf32> to vector<8x32xf32>
    %177 = arith.subf %162, %176 : vector<8x32xf32>
    %cst_64 = arith.constant 9.99999997E-7 : f32
    %178 = vector.broadcast %cst_64 : f32 to vector<8x1xf32>
    %179 = arith.addf %175, %178 : vector<8x1xf32>
    %180 = math.rsqrt %179 : vector<8x1xf32>
    %181 = vector.broadcast %180 : vector<8x1xf32> to vector<8x32xf32>
    %182 = arith.mulf %177, %181 : vector<8x32xf32>
    %183 = vector.broadcast %12 : vector<1x32xf32> to vector<8x32xf32>
    %184 = arith.mulf %182, %183 : vector<8x32xf32>
    %185 = vector.broadcast %13 : vector<1x32xf32> to vector<8x32xf32>
    %186 = arith.addf %184, %185 : vector<8x32xf32>
    %c8 = arith.constant 8 : index
    %c0_65 = arith.constant 0 : index
    %187 = vector.load %arg12[%c8, %c0_65] : memref<16x32xf32, #tpu.memory_space<vmem>>, vector<8x32xf32>
    tpu.vector_store %arg12[%c8, %c0_65], %186 {strides = array<i32>} : memref<16x32xf32, #tpu.memory_space<vmem>>, vector<8x32xf32>,
    return
  }
  func.func @transform_0(%arg0: i32) -> (i32, i32) {
    %c0_i32 = arith.constant 0 : i32
    %c0_i32_0 = arith.constant 0 : i32
    return %arg0, %c0_i32 : i32, i32
  }
  func.func @transform_1(%arg0: i32) -> (i32, i32) {
    %c0_i32 = arith.constant 0 : i32
    %c0_i32_0 = arith.constant 0 : i32
    return %arg0, %c0_i32 : i32, i32
  }
  func.func @transform_2(%arg0: i32) -> (i32, i32) {
    %c0_i32 = arith.constant 0 : i32
    %c0_i32_0 = arith.constant 0 : i32
    return %arg0, %c0_i32 : i32, i32
  }
  func.func @transform_3(%arg0: i32) -> (i32, i32, i32) {
    %c0_i32 = arith.constant 0 : i32
    %c0_i32_0 = arith.constant 0 : i32
    %c0_i32_1 = arith.constant 0 : i32
    return %arg0, %c0_i32, %c0_i32_0 : i32, i32, i32
  }
  func.func @transform_4(%arg0: i32) -> (i32, i32) {
    %c0_i32 = arith.constant 0 : i32
    %c0_i32_0 = arith.constant 0 : i32
    %c0_i32_1 = arith.constant 0 : i32
    return %c0_i32, %c0_i32_0 : i32, i32
  }
  func.func @transform_5(%arg0: i32) -> (i32, i32) {
    %c0_i32 = arith.constant 0 : i32
    %c0_i32_0 = arith.constant 0 : i32
    %c0_i32_1 = arith.constant 0 : i32
    return %c0_i32, %c0_i32_0 : i32, i32
  }
  func.func @transform_6(%arg0: i32) -> (i32, i32) {
    %c0_i32 = arith.constant 0 : i32
    %c0_i32_0 = arith.constant 0 : i32
    %c0_i32_1 = arith.constant 0 : i32
    return %c0_i32, %c0_i32_0 : i32, i32
  }
  func.func @transform_7(%arg0: i32) -> (i32, i32) {
    %c0_i32 = arith.constant 0 : i32
    %c0_i32_0 = arith.constant 0 : i32
    %c0_i32_1 = arith.constant 0 : i32
    return %c0_i32, %c0_i32_0 : i32, i32
  }
  func.func @transform_8(%arg0: i32) -> (i32, i32) {
    %c0_i32 = arith.constant 0 : i32
    %c0_i32_0 = arith.constant 0 : i32
    %c0_i32_1 = arith.constant 0 : i32
    return %c0_i32, %c0_i32_0 : i32, i32
  }
  func.func @transform_9(%arg0: i32) -> (i32, i32) {
    %c0_i32 = arith.constant 0 : i32
    %c0_i32_0 = arith.constant 0 : i32
    %c0_i32_1 = arith.constant 0 : i32
    return %c0_i32, %c0_i32_0 : i32, i32
  }
  func.func @transform_10(%arg0: i32) -> (i32, i32) {
    %c0_i32 = arith.constant 0 : i32
    %c0_i32_0 = arith.constant 0 : i32
    %c0_i32_1 = arith.constant 0 : i32
    return %c0_i32, %c0_i32_0 : i32, i32
  }
  func.func @transform_11(%arg0: i32) -> (i32, i32) {
    %c0_i32 = arith.constant 0 : i32
    %c0_i32_0 = arith.constant 0 : i32
    return %arg0, %c0_i32 : i32, i32
  }
}

</mosaic_0001>

<llo_original>
// kernel: tpu_custom_call.1
$region0: #{tpu_custom_call.1}
  #allocation0 [shape = 'u32[]', space=smem, size = 0x4, offset = 0x4, fixed_abs, tag = 'smem constant byte address 0x4 - core index']
  #allocation1 [shape = 'u32[72,128]{1,0:T(1,128)}', space=vmem, size = 0x9000, scoped, tag = 'internal scratch']
  %s0 = inlined_call_operand.hbm [shape: f32[16,32], index: 0, kind: input, shape index: {}]
  %s1 = inlined_call_operand.hbm [shape: bf16[16,32], index: 1, kind: input, shape index: {}]
  %s2 = inlined_call_operand.hbm [shape: bf16[16,32], index: 2, kind: input, shape index: {}]
  %s3 = inlined_call_operand.hbm [shape: s32[2,8,8], index: 3, kind: input, shape index: {}]
  %s4 = inlined_call_operand.hbm [shape: bf16[32,32], index: 4, kind: input, shape index: {}]
  %s5 = inlined_call_operand.hbm [shape: bf16[32,32], index: 5, kind: input, shape index: {}]
  %s6 = inlined_call_operand.hbm [shape: bf16[32,32], index: 6, kind: input, shape index: {}]
  %s7 = inlined_call_operand.hbm [shape: bf16[32,32], index: 7, kind: input, shape index: {}]
  %s8 = inlined_call_operand.vmem [shape: f32[1,32], index: 8, kind: input, shape index: {}]
  %s9 = inlined_call_operand.vmem [shape: f32[1,32], index: 9, kind: input, shape index: {}]
  %s10 = inlined_call_operand.vmem [shape: f32[1,32], index: 10, kind: input, shape index: {}]
  %s11 = inlined_call_operand.hbm [shape: f32[16,32], index: 11, kind: output, shape index: {}]
  %s12 = sld [smem:[#allocation0]]
  $region86: #{tpu_custom_call.1} parent=0
    _
  %s14 = ssub.s32 1, %s12
  %s15 = scalar_select 0, %s14, %s12
  $region1: #{tpu_custom_call.1} parent=0
    #allocation2 [shape = 'u8[8192]{0}', space=vmem, size = 0x2000, scoped, tag = 'input window, operand 0, single buffered']
    #allocation3 [shape = 's32[1]{0}', space=sflag, size = 0x4, scoped, tag = 'scoped memory for tpu_custom_call.1']
    #allocation4 [shape = 's32[1]{0}', space=sflag, size = 0x4, scoped, tag = 'scoped memory for tpu_custom_call.1']
    #allocation5 [shape = 'u8[4096]{0}', space=vmem, size = 0x1000, scoped, tag = 'input window, operand 1, single buffered']
    #allocation6 [shape = 's32[1]{0}', space=sflag, size = 0x4, scoped, tag = 'scoped memory for tpu_custom_call.1']
    #allocation7 [shape = 'u8[4096]{0}', space=vmem, size = 0x1000, scoped, tag = 'input window, operand 2, single buffered']
    #allocation8 [shape = 'u8[8192]{0}', space=vmem, size = 0x2000, scoped, tag = 'input window, operand 3, single buffered']
    #allocation9 [shape = 's32[1]{0}', space=sflag, size = 0x4, scoped, tag = 'scoped memory for tpu_custom_call.1']
    #allocation10 [shape = 'u8[8192]{0}', space=vmem, size = 0x2000, scoped, tag = 'input window, operand 4, single buffered']
    #allocation11 [shape = 'u8[8192]{0}', space=vmem, size = 0x2000, scoped, tag = 'input window, operand 5, single buffered']
    #allocation12 [shape = 's32[1]{0}', space=sflag, size = 0x4, scoped, tag = 'scoped memory for tpu_custom_call.1']
    #allocation13 [shape = 'u8[8192]{0}', space=vmem, size = 0x2000, scoped, tag = 'input window, operand 6, single buffered']
    #allocation14 [shape = 'u8[8192]{0}', space=vmem, size = 0x2000, scoped, tag = 'input window, operand 7, single buffered']
    #allocation15 [shape = 's32[1]{0}', space=sflag, size = 0x4, scoped, tag = 'scoped memory for tpu_custom_call.1']
    #allocation16 [shape = 'u8[8192]{0}', space=vmem, size = 0x2000, scoped, tag = 'output window, operand 0, single buffered']
    %16 = vsyncpa [#allocation3], 0
    %17 = vsyncpa [#allocation6], 0
    %18 = vsyncpa [#allocation9], 0
    %19 = vsyncpa [#allocation12], 0
    %20 = vsyncpa [#allocation15], 0
    %21 = vsyncpa [#allocation4], 0
    // Predicated region
    $region2: #{tpu_custom_call.1} parent=1 // pred_check
      _
    $region3: #{tpu_custom_call.1} parent=1 // pred_check_branch
      %23 = sbr.rel (0) target = $region5
    $region4: #{tpu_custom_call.1} parent=1 // pred_region
      %25 = vsyncadd [#allocation3], 0
      %s26 = sshll.u32 %s0, 4
      %s27 = int_to_ptr.hbm [resolvable:$true] %s26
      %s28 = sshll.u32 [#allocation2], 4
      %s29 = int_to_ptr.vmem [resolvable:$true] %s28
      %34 = dma.hbm_to_vmem [thread:$0]  %s27, 256, %s29, [#allocation3], 128, 128, 8
    $region5: #{tpu_custom_call.1} parent=1 // pred_fallthru
      _
    // Predicated region
    $region6: #{tpu_custom_call.1} parent=1 // pred_check
      _
    $region7: #{tpu_custom_call.1} parent=1 // pred_check_branch
      %36 = sbr.rel (0) target = $region9
    $region8: #{tpu_custom_call.1} parent=1 // pred_region
      %38 = vsyncadd [#allocation6], 0
      %s39 = sshll.u32 %s1, 4
      %s40 = int_to_ptr.hbm [resolvable:$true] %s39
      %s41 = sshll.u32 [#allocation5], 4
      %s42 = int_to_ptr.vmem [resolvable:$true] %s41
      %47 = dma.hbm_to_vmem [thread:$0]  %s40, 128, %s42, [#allocation6], 64, 64, 4
    $region9: #{tpu_custom_call.1} parent=1 // pred_fallthru
      _
    // Predicated region
    $region10: #{tpu_custom_call.1} parent=1 // pred_check
      _
    $region11: #{tpu_custom_call.1} parent=1 // pred_check_branch
      %49 = sbr.rel (0) target = $region13
    $region12: #{tpu_custom_call.1} parent=1 // pred_region
      %51 = vsyncadd [#allocation6], 0
      %s52 = sshll.u32 %s2, 4
      %s53 = int_to_ptr.hbm [resolvable:$true] %s52
      %s54 = sshll.u32 [#allocation7], 4
      %s55 = int_to_ptr.vmem [resolvable:$true] %s54
      %60 = dma.hbm_to_vmem [thread:$0]  %s53, 128, %s55, [#allocation6], 64, 64, 4
    $region13: #{tpu_custom_call.1} parent=1 // pred_fallthru
      _
    // Predicated region
    $region14: #{tpu_custom_call.1} parent=1 // pred_check
      _
    $region15: #{tpu_custom_call.1} parent=1 // pred_check_branch
      %62 = sbr.rel (0) target = $region17
    $region16: #{tpu_custom_call.1} parent=1 // pred_region
      %64 = vsyncadd [#allocation9], 0
      %s65 = sshll.u32 %s3, 4
      %s66 = int_to_ptr.hbm [resolvable:$true] %s65
      %s67 = sshll.u32 [#allocation8], 4
      %s68 = int_to_ptr.vmem [resolvable:$true] %s67
      %73 = dma.hbm_to_vmem [thread:$0]  %s66, 256, %s68, [#allocation9], 128, 128, 8
    $region17: #{tpu_custom_call.1} parent=1 // pred_fallthru
      _
    // Predicated region
    $region18: #{tpu_custom_call.1} parent=1 // pred_check
      _
    $region19: #{tpu_custom_call.1} parent=1 // pred_check_branch
      %75 = sbr.rel (0) target = $region21
    $region20: #{tpu_custom_call.1} parent=1 // pred_region
      %77 = vsyncadd [#allocation9], 0
      %s78 = sshll.u32 %s4, 4
      %s79 = int_to_ptr.hbm [resolvable:$true] %s78
      %s80 = sshll.u32 [#allocation10], 4
      %s81 = int_to_ptr.vmem [resolvable:$true] %s80
      %86 = dma.hbm_to_vmem [thread:$0]  %s79, 256, %s81, [#allocation9], 64, 64, 4
    $region21: #{tpu_custom_call.1} parent=1 // pred_fallthru
      _
    // Predicated region
    $region22: #{tpu_custom_call.1} parent=1 // pred_check
      _
    $region23: #{tpu_custom_call.1} parent=1 // pred_check_branch
      %88 = sbr.rel (0) target = $region25
    $region24: #{tpu_custom_call.1} parent=1 // pred_region
      %90 = vsyncadd [#allocation12], 0
      %s91 = sshll.u32 %s5, 4
      %s92 = int_to_ptr.hbm [resolvable:$true] %s91
      %s93 = sshll.u32 [#allocation11], 4
      %s94 = int_to_ptr.vmem [resolvable:$true] %s93
      %99 = dma.hbm_to_vmem [thread:$0]  %s92, 256, %s94, [#allocation12], 64, 64, 4
    $region25: #{tpu_custom_call.1} parent=1 // pred_fallthru
      _
    // Predicated region
    $region26: #{tpu_custom_call.1} parent=1 // pred_check
      _
    $region27: #{tpu_custom_call.1} parent=1 // pred_check_branch
      %101 = sbr.rel (0) target = $region29
    $region28: #{tpu_custom_call.1} parent=1 // pred_region
      %103 = vsyncadd [#allocation12], 0
      %s104 = sshll.u32 %s6, 4
      %s105 = int_to_ptr.hbm [resolvable:$true] %s104
      %s106 = sshll.u32 [#allocation13], 4
      %s107 = int_to_ptr.vmem [resolvable:$true] %s106
      %112 = dma.hbm_to_vmem [thread:$0]  %s105, 256, %s107, [#allocation12], 64, 64, 4
    $region29: #{tpu_custom_call.1} parent=1 // pred_fallthru
      _
    // Predicated region
    $region30: #{tpu_custom_call.1} parent=1 // pred_check
      _
    $region31: #{tpu_custom_call.1} parent=1 // pred_check_branch
      %114 = sbr.rel (0) target = $region33
    $region32: #{tpu_custom_call.1} parent=1 // pred_region
      %116 = vsyncadd [#allocation15], 0
      %s117 = sshll.u32 %s7, 4
      %s118 = int_to_ptr.hbm [resolvable:$true] %s117
      %s119 = sshll.u32 [#allocation14], 4
      %s120 = int_to_ptr.vmem [resolvable:$true] %s119
      %125 = dma.hbm_to_vmem [thread:$0]  %s118, 256, %s120, [#allocation15], 64, 64, 4
    $region33: #{tpu_custom_call.1} parent=1 // pred_fallthru
      _
    // Predicated region
    $region34: #{tpu_custom_call.1} parent=1 // pred_check
      _
    $region35: #{tpu_custom_call.1} parent=1 // pred_check_branch
      %127 = sbr.rel (0) target = $region37
    $region36: #{tpu_custom_call.1} parent=1 // pred_region
      _
    $region37: #{tpu_custom_call.1} parent=1 // pred_fallthru
      _
    // Predicated region
    $region38: #{tpu_custom_call.1} parent=1 // pred_check
      _
    $region39: #{tpu_custom_call.1} parent=1 // pred_check_branch
      %129 = sbr.rel (0) target = $region41
    $region40: #{tpu_custom_call.1} parent=1 // pred_region
      _
    $region41: #{tpu_custom_call.1} parent=1 // pred_fallthru
      _
    // Predicated region
    $region42: #{tpu_custom_call.1} parent=1 // pred_check
      _
    $region43: #{tpu_custom_call.1} parent=1 // pred_check_branch
      %131 = sbr.rel (0) target = $region45
    $region44: #{tpu_custom_call.1} parent=1 // pred_region
      _
    $region45: #{tpu_custom_call.1} parent=1 // pred_fallthru
      _
    // Predicated region
    $region46: #{tpu_custom_call.1} parent=1 // pred_check
      _
    $region47: #{tpu_custom_call.1} parent=1 // pred_check_branch
      %133 = sbr.rel (0) target = $region49
    $region48: #{tpu_custom_call.1} parent=1 // pred_region
      %135 = dma.done [#allocation3], 256
    $region49: #{tpu_custom_call.1} parent=1 // pred_fallthru
      _
    // Predicated region
    $region50: #{tpu_custom_call.1} parent=1 // pred_check
      _
    $region51: #{tpu_custom_call.1} parent=1 // pred_check_branch
      %137 = sbr.rel (0) target = $region53
    $region52: #{tpu_custom_call.1} parent=1 // pred_region
      %139 = dma.done [#allocation6], 128
    $region53: #{tpu_custom_call.1} parent=1 // pred_fallthru
      _
    // Predicated region
    $region54: #{tpu_custom_call.1} parent=1 // pred_check
      _
    $region55: #{tpu_custom_call.1} parent=1 // pred_check_branch
      %141 = sbr.rel (0) target = $region57
    $region56: #{tpu_custom_call.1} parent=1 // pred_region
      %143 = dma.done [#allocation6], 128
    $region57: #{tpu_custom_call.1} parent=1 // pred_fallthru
      _
    // Predicated region
    $region58: #{tpu_custom_call.1} parent=1 // pred_check
      _
    $region59: #{tpu_custom_call.1} parent=1 // pred_check_branch
      %145 = sbr.rel (0) target = $region61
    $region60: #{tpu_custom_call.1} parent=1 // pred_region
      %147 = dma.done [#allocation9], 256
    $region61: #{tpu_custom_call.1} parent=1 // pred_fallthru
      _
    // Predicated region
    $region62: #{tpu_custom_call.1} parent=1 // pred_check
      _
    $region63: #{tpu_custom_call.1} parent=1 // pred_check_branch
      %149 = sbr.rel (0) target = $region65
    $region64: #{tpu_custom_call.1} parent=1 // pred_region
      %151 = dma.done [#allocation9], 256
    $region65: #{tpu_custom_call.1} parent=1 // pred_fallthru
      _
    // Predicated region
    $region66: #{tpu_custom_call.1} parent=1 // pred_check
      _
    $region67: #{tpu_custom_call.1} parent=1 // pred_check_branch
      %153 = sbr.rel (0) target = $region69
    $region68: #{tpu_custom_call.1} parent=1 // pred_region
      %155 = dma.done [#allocation12], 256
    $region69: #{tpu_custom_call.1} parent=1 // pred_fallthru
      _
    // Predicated region
    $region70: #{tpu_custom_call.1} parent=1 // pred_check
      _
    $region71: #{tpu_custom_call.1} parent=1 // pred_check_branch
      %157 = sbr.rel (0) target = $region73
    $region72: #{tpu_custom_call.1} parent=1 // pred_region
      %159 = dma.done [#allocation12], 256
    $region73: #{tpu_custom_call.1} parent=1 // pred_fallthru
      _
    // Predicated region
    $region74: #{tpu_custom_call.1} parent=1 // pred_check
      _
    $region75: #{tpu_custom_call.1} parent=1 // pred_check_branch
      %161 = sbr.rel (0) target = $region77
    $region76: #{tpu_custom_call.1} parent=1 // pred_region
      %163 = dma.done [#allocation15], 256
    $region77: #{tpu_custom_call.1} parent=1 // pred_fallthru
      _
    %v165 = vld [vmem:[#allocation2] sm:$0xff]
    %v166 = vld [vmem:[#allocation2 + $0x8] sm:$0xff]
    %v167 = vpack.c.bf16 %v166, %v165
    %v168 = vld [vmem:[#allocation10] sm:$0xf]
    %v169 = vld [vmem:[#allocation10 + $0x4] sm:$0xf]
    %v170 = vld [vmem:[#allocation10 + $0x8] sm:$0xf]
    %v171 = vld [vmem:[#allocation10 + $0xc] sm:$0xf]
    %v176 = vunpack.c.l.b16 %v168
    %v177 = vunpack.c.l.b16 %v169
    %v178 = vunpack.c.l.b16 %v170
    %v179 = vunpack.c.l.b16 %v171
    %v180 = vpack.c.b16 %v177, %v176
    %v181 = vpack.c.b16 %v179, %v178
    %vm184 = vcmask 261120
    %v186 = vsel %vm184, %v167, 0
    %188 = vmatpush.bf16.msra.mxu0 0
    %189 = vmatpush.bf16.msra.mxu0 0
    %190 = vmatpush.bf16.msra.mxu0 0
    %191 = vmatpush.bf16.msra.mxu0 0
    %192 = vmatpush.bf16.msra.mxu0 0
    %193 = vmatpush.bf16.msra.mxu0 0
    %194 = vmatpush.bf16.msra.mxu0 %v181
    %195 = vmatpush.bf16.msra.mxu0 %v180
    %196 = vmatmul.bf16.gmra.mxu0 %v186
    %v197 = vpop.f32.mrf.mxu0
    %v198 = vadd.f32 0.0, %v197
    %v199 = vpop.f32.mrf.mxu0
    %v200 = vadd.f32 0.0, %v199
    %201 = vdwg.mxu0
    %v202 = vld [vmem:[#allocation5] sm:$0xf]
    %v203 = vld [vmem:[#allocation5 + $0x4] sm:$0xf]
    %v204 = vld [vmem:[#allocation11] sm:$0xf]
    %v205 = vld [vmem:[#allocation11 + $0x4] sm:$0xf]
    %v206 = vld [vmem:[#allocation11 + $0x8] sm:$0xf]
    %v207 = vld [vmem:[#allocation11 + $0xc] sm:$0xf]
    %v210 = vunpack.c.l.b16 %v202
    %v211 = vunpack.c.l.b16 %v203
    %v212 = vpack.c.b16 %v211, %v210
    %v217 = vunpack.c.l.b16 %v204
    %v218 = vunpack.c.l.b16 %v205
    %v219 = vunpack.c.l.b16 %v206
    %v220 = vunpack.c.l.b16 %v207
    %v221 = vpack.c.b16 %v218, %v217
    %v222 = vpack.c.b16 %v220, %v219
    %v226 = vsel %vm184, %v212, 0
    %228 = vmatpush.bf16.msra.mxu0 0
    %229 = vmatpush.bf16.msra.mxu0 0
    %230 = vmatpush.bf16.msra.mxu0 0
    %231 = vmatpush.bf16.msra.mxu0 0
    %232 = vmatpush.bf16.msra.mxu0 0
    %233 = vmatpush.bf16.msra.mxu0 0
    %234 = vmatpush.bf16.msra.mxu0 %v222
    %235 = vmatpush.bf16.msra.mxu0 %v221
    %236 = vmatmul.bf16.gmra.mxu0 %v226
    %v237 = vpop.f32.mrf.mxu0
    %v238 = vadd.f32 0.0, %v237
    %v239 = vpop.f32.mrf.mxu0
    %v240 = vadd.f32 0.0, %v239
    %241 = vdwg.mxu0
    %v242 = vld [vmem:[#allocation7] sm:$0xf]
    %v243 = vld [vmem:[#allocation7 + $0x4] sm:$0xf]
    %v244 = vld [vmem:[#allocation13] sm:$0xf]
    %v245 = vld [vmem:[#allocation13 + $0x4] sm:$0xf]
    %v246 = vld [vmem:[#allocation13 + $0x8] sm:$0xf]
    %v247 = vld [vmem:[#allocation13 + $0xc] sm:$0xf]
    %v250 = vunpack.c.l.b16 %v242
    %v251 = vunpack.c.l.b16 %v243
    %v252 = vpack.c.b16 %v251, %v250
    %v257 = vunpack.c.l.b16 %v244
    %v258 = vunpack.c.l.b16 %v245
    %v259 = vunpack.c.l.b16 %v246
    %v260 = vunpack.c.l.b16 %v247
    %v261 = vpack.c.b16 %v258, %v257
    %v262 = vpack.c.b16 %v260, %v259
    %v266 = vsel %vm184, %v252, 0
    %268 = vmatpush.bf16.msra.mxu0 0
    %269 = vmatpush.bf16.msra.mxu0 0
    %270 = vmatpush.bf16.msra.mxu0 0
    %271 = vmatpush.bf16.msra.mxu0 0
    %272 = vmatpush.bf16.msra.mxu0 0
    %273 = vmatpush.bf16.msra.mxu0 0
    %274 = vmatpush.bf16.msra.mxu0 %v262
    %275 = vmatpush.bf16.msra.mxu0 %v261
    %276 = vmatmul.bf16.gmra.mxu0 %v266
    %v277 = vpop.f32.mrf.mxu0
    %v278 = vadd.f32 0.0, %v277
    %v279 = vpop.f32.mrf.mxu0
    %v280 = vadd.f32 0.0, %v279
    %281 = vdwg.mxu0
    %v282 = vld [vmem:[#allocation14] sm:$0xf]
    %v283 = vld [vmem:[#allocation14 + $0x4] sm:$0xf]
    %v284 = vld [vmem:[#allocation14 + $0x8] sm:$0xf]
    %v285 = vld [vmem:[#allocation14 + $0xc] sm:$0xf]
    %v286 = vld [vmem:[%s8] sm:$0x1]
    %v287 = vld [vmem:[%s9] sm:$0x1]
    %v288 = vld [vmem:[%s10] sm:$0x1]
    %v289 = vld [vmem:[#allocation8] sm:$0xff]
    %vm290 = vcmp.eq.s32.totalorder %v289, 0
    %v291 = vsel %vm290, -1e+20, 0.0
    %v292 = vpack.c.bf16 %v198, %v198
    %v293 = vpack.c.bf16 %v238, %v238
    %v294 = vpack.c.bf16 %v278, %v278
    %vm295 = vcmask 130048
    %v297 = vsel %vm295, %v292, 0
    %v300 = vsel %vm295, %v293, 0
    %302 = vmatpush.bf16.xpose.msra.mxu0 0
    %303 = vmatpush.bf16.xpose.msra.mxu0 0
    %304 = vmatpush.bf16.xpose.msra.mxu0 0
    %305 = vmatpush.bf16.xpose.msra.mxu0 0
    %306 = vmatpush.bf16.xpose.msra.mxu0 0
    %307 = vmatpush.bf16.xpose.msra.mxu0 0
    %308 = vmatpush.bf16.xpose.msra.mxu0 0
    %309 = vmatpush.bf16.xpose.msra.mxu0 %v300
    %310 = vmatmul.bf16.gmra.mxu0 %v297
    %v311 = vpop.f32.mrf.mxu0
    %v312 = vadd.f32 %v291, %v311
    %v313 = vpop.f32.mrf.mxu0
    %314 = vdwg.mxu0
    %vm315 = vcmask 64512
    %v316 = vsel %vm315, %v312, -inf
    %317 = vmax.xlane.f32.xlu0 %v316
    %v318 = vpop.xlane.xlu0 %317
    %v319 = vsub.f32 %v312, %v318
    %v320 = vmul.f32 %v319, 1.442695
    %v321 = vpow.pop %v320
    %v322 = vsel %vm315, %v321, 0.0
    %323 = vadd.xlane.f32.xlu0 %v322
    %v324 = vpop.xlane.xlu0 %323
    %v325 = vrcp.pop %v324
    %v326 = vmul.f32 %v321, %v325
    %v327 = vpack.c.bf16 %v326, %v326
    %v329 = vsel %vm315, %v327, 0
    %vm331 = vcmask 1043456
    %v333 = vsel %vm331, %v294, 0
    %335 = vmatpush.bf16.msra.mxu0 0
    %336 = vmatpush.bf16.msra.mxu0 0
    %337 = vmatpush.bf16.msra.mxu0 0
    %338 = vmatpush.bf16.msra.mxu0 0
    %339 = vmatpush.bf16.msra.mxu0 0
    %340 = vmatpush.bf16.msra.mxu0 0
    %341 = vmatpush.bf16.msra.mxu0 0
    %342 = vmatpush.bf16.msra.mxu0 %v333
    %343 = vmatmul.bf16.gmra.mxu0 %v329
    %v344 = vpop.f32.mrf.mxu0
    %v345 = vadd.f32 0.0, %v344
    %v346 = vpop.f32.mrf.mxu0
    %347 = vdwg.mxu0
    %v348 = vpack.c.bf16 %v345, %v345
    %350 = vrot.lane.b32.xlu0 %v292, 112
    %v351 = vpop.permute.xlu0 %350
    %353 = vrot.lane.b32.xlu0 %v293, 112
    %v354 = vpop.permute.xlu0 %353
    %v356 = vsel %vm295, %v351, 0
    %v359 = vsel %vm295, %v354, 0
    %361 = vmatpush.bf16.xpose.msra.mxu0 0
    %362 = vmatpush.bf16.xpose.msra.mxu0 0
    %363 = vmatpush.bf16.xpose.msra.mxu0 0
    %364 = vmatpush.bf16.xpose.msra.mxu0 0
    %365 = vmatpush.bf16.xpose.msra.mxu0 0
    %366 = vmatpush.bf16.xpose.msra.mxu0 0
    %367 = vmatpush.bf16.xpose.msra.mxu0 0
    %368 = vmatpush.bf16.xpose.msra.mxu0 %v359
    %369 = vmatmul.bf16.gmra.mxu0 %v356
    %v370 = vpop.f32.mrf.mxu0
    %v371 = vadd.f32 %v291, %v370
    %v372 = vpop.f32.mrf.mxu0
    %373 = vdwg.mxu0
    %v374 = vsel %vm315, %v371, -inf
    %375 = vmax.xlane.f32.xlu0 %v374
    %v376 = vpop.xlane.xlu0 %375
    %v377 = vsub.f32 %v371, %v376
    %v378 = vmul.f32 %v377, 1.442695
    %v379 = vpow.pop %v378
    %v380 = vsel %vm315, %v379, 0.0
    %381 = vadd.xlane.f32.xlu0 %v380
    %v382 = vpop.xlane.xlu0 %381
    %v383 = vrcp.pop %v382
    %v384 = vmul.f32 %v379, %v383
    %v385 = vpack.c.bf16 %v384, %v384
    %387 = vrot.lane.b32.xlu0 %v294, 112
    %v388 = vpop.permute.xlu0 %387
    %v390 = vsel %vm315, %v385, 0
    %v393 = vsel %vm331, %v388, 0
    %395 = vmatpush.bf16.msra.mxu0 0
    %396 = vmatpush.bf16.msra.mxu0 0
    %397 = vmatpush.bf16.msra.mxu0 0
    %398 = vmatpush.bf16.msra.mxu0 0
    %399 = vmatpush.bf16.msra.mxu0 0
    %400 = vmatpush.bf16.msra.mxu0 0
    %401 = vmatpush.bf16.msra.mxu0 0
    %402 = vmatpush.bf16.msra.mxu0 %v393
    %403 = vmatmul.bf16.gmra.mxu0 %v390
    %v404 = vpop.f32.mrf.mxu0
    %v405 = vadd.f32 0.0, %v404
    %v406 = vpop.f32.mrf.mxu0
    %407 = vdwg.mxu0
    %v408 = vpack.c.bf16 %v405, %v405
    %v411 = vunpack.c.l.b16 %v284
    %v412 = vunpack.c.l.b16 %v285
    %v413 = vpack.c.b16 %v412, %v411
    %v416 = vsel %vm295, %v408, 0
    %418 = vmatpush.bf16.msra.mxu0 0
    %419 = vmatpush.bf16.msra.mxu0 0
    %420 = vmatpush.bf16.msra.mxu0 0
    %421 = vmatpush.bf16.msra.mxu0 0
    %422 = vmatpush.bf16.msra.mxu0 0
    %423 = vmatpush.bf16.msra.mxu0 0
    %424 = vmatpush.bf16.msra.mxu0 0
    %425 = vmatpush.bf16.msra.mxu0 %v413
    %426 = vmatmul.bf16.gmra.mxu0 %v416
    %v427 = vpop.f32.mrf.mxu0
    %v428 = vadd.f32 0.0, %v427
    %v429 = vpop.f32.mrf.mxu0
    %430 = vdwg.mxu0
    %v433 = vunpack.c.l.b16 %v282
    %v434 = vunpack.c.l.b16 %v283
    %v435 = vpack.c.b16 %v434, %v433
    %v438 = vsel %vm295, %v348, 0
    %440 = vmatpush.bf16.msra.mxu0 0
    %441 = vmatpush.bf16.msra.mxu0 0
    %442 = vmatpush.bf16.msra.mxu0 0
    %443 = vmatpush.bf16.msra.mxu0 0
    %444 = vmatpush.bf16.msra.mxu0 0
    %445 = vmatpush.bf16.msra.mxu0 0
    %446 = vmatpush.bf16.msra.mxu0 0
    %447 = vmatpush.bf16.msra.mxu0 %v435
    %448 = vmatmul.bf16.gmra.mxu0 %v438
    %v449 = vpop.f32.mrf.mxu0
    %v450 = vadd.f32 %v428, %v449
    %v451 = vpop.f32.mrf.mxu0
    %452 = vdwg.mxu0
    %v454 = vperm.slane %v286, 0
    %v456 = vadd.f32 %v450, %v454
    %v457 = vadd.f32 %v456, %v165
    %v458 = vsel %vm184, %v457, 0.0
    %459 = vadd.xlane.f32.xlu0 %v458
    %v460 = vpop.xlane.xlu0 %459
    %v461 = vrcp.pop 32.0
    %v462 = vmul.f32 32.0, %v461
    %v463 = vsub.f32 1.0, %v462
    %v464 = vmul.f32 %v461, %v463
    %v465 = vadd.f32 %v461, %v464
    %vm466 = vweird.f32 %v461
    %v467 = vsel %vm466, %v461, %v465
    %v468 = vmul.f32 %v460, %v467
    %v469 = vsub.f32 %v457, %v468
    %v470 = vmul.f32 %v469, %v469
    %v471 = vsel %vm184, %v470, 0.0
    %472 = vadd.xlane.f32.xlu0 %v471
    %v473 = vpop.xlane.xlu0 %472
    %v474 = vmul.f32 %v473, %v467
    %v475 = vadd.f32 %v474, 1e-06
    %v476 = vrsqrt.pop %v475
    %v477 = vmul.f32 %v476, %v475
    %v478 = vmul.f32 %v477, %v476
    %v479 = vmul.f32 0.5, %v478
    %v480 = vsub.f32 1.5, %v479
    %v481 = vmul.f32 %v476, %v480
    %vm482 = vweird.f32 %v475
    %vm483 = vweird.f32 %v476
    %vm484 = vmor %vm482, %vm483
    %v485 = vsel %vm484, %v476, %v481
    %v486 = vmul.f32 %v469, %v485
    %v488 = vperm.slane %v287, 0
    %v490 = vmul.f32 %v486, %v488
    %v492 = vperm.slane %v288, 0
    %v494 = vadd.f32 %v490, %v492
    %495 = vst.msk [vmem:[#allocation16] sm:$0xff] %vm184, %v494
    %s496 = scalar_lea.vmem [#allocation8], 8
    %v497 = vld [vmem:[%s496] sm:$0xff]
    %vm498 = vcmp.eq.s32.totalorder %v497, 0
    %v499 = vsel %vm498, -1e+20, 0.0
    %v500 = vpack.c.bf16 %v200, %v200
    %v501 = vpack.c.bf16 %v240, %v240
    %v502 = vpack.c.bf16 %v280, %v280
    %v504 = vsel %vm295, %v500, 0
    %v507 = vsel %vm295, %v501, 0
    %509 = vmatpush.bf16.xpose.msra.mxu0 0
    %510 = vmatpush.bf16.xpose.msra.mxu0 0
    %511 = vmatpush.bf16.xpose.msra.mxu0 0
    %512 = vmatpush.bf16.xpose.msra.mxu0 0
    %513 = vmatpush.bf16.xpose.msra.mxu0 0
    %514 = vmatpush.bf16.xpose.msra.mxu0 0
    %515 = vmatpush.bf16.xpose.msra.mxu0 0
    %516 = vmatpush.bf16.xpose.msra.mxu0 %v507
    %517 = vmatmul.bf16.gmra.mxu0 %v504
    %v518 = vpop.f32.mrf.mxu0
    %v519 = vadd.f32 %v499, %v518
    %v520 = vpop.f32.mrf.mxu0
    %521 = vdwg.mxu0
    %v522 = vsel %vm315, %v519, -inf
    %523 = vmax.xlane.f32.xlu0 %v522
    %v524 = vpop.xlane.xlu0 %523
    %v525 = vsub.f32 %v519, %v524
    %v526 = vmul.f32 %v525, 1.442695
    %v527 = vpow.pop %v526
    %v528 = vsel %vm315, %v527, 0.0
    %529 = vadd.xlane.f32.xlu0 %v528
    %v530 = vpop.xlane.xlu0 %529
    %v531 = vrcp.pop %v530
    %v532 = vmul.f32 %v527, %v531
    %v533 = vpack.c.bf16 %v532, %v532
    %v535 = vsel %vm315, %v533, 0
    %v538 = vsel %vm331, %v502, 0
    %540 = vmatpush.bf16.msra.mxu0 0
    %541 = vmatpush.bf16.msra.mxu0 0
    %542 = vmatpush.bf16.msra.mxu0 0
    %543 = vmatpush.bf16.msra.mxu0 0
    %544 = vmatpush.bf16.msra.mxu0 0
    %545 = vmatpush.bf16.msra.mxu0 0
    %546 = vmatpush.bf16.msra.mxu0 0
    %547 = vmatpush.bf16.msra.mxu0 %v538
    %548 = vmatmul.bf16.gmra.mxu0 %v535
    %v549 = vpop.f32.mrf.mxu0
    %v550 = vadd.f32 0.0, %v549
    %v551 = vpop.f32.mrf.mxu0
    %552 = vdwg.mxu0
    %v553 = vpack.c.bf16 %v550, %v550
    %555 = vrot.lane.b32.xlu0 %v500, 112
    %v556 = vpop.permute.xlu0 %555
    %558 = vrot.lane.b32.xlu0 %v501, 112
    %v559 = vpop.permute.xlu0 %558
    %v561 = vsel %vm295, %v556, 0
    %v564 = vsel %vm295, %v559, 0
    %566 = vmatpush.bf16.xpose.msra.mxu0 0
    %567 = vmatpush.bf16.xpose.msra.mxu0 0
    %568 = vmatpush.bf16.xpose.msra.mxu0 0
    %569 = vmatpush.bf16.xpose.msra.mxu0 0
    %570 = vmatpush.bf16.xpose.msra.mxu0 0
    %571 = vmatpush.bf16.xpose.msra.mxu0 0
    %572 = vmatpush.bf16.xpose.msra.mxu0 0
    %573 = vmatpush.bf16.xpose.msra.mxu0 %v564
    %574 = vmatmul.bf16.gmra.mxu0 %v561
    %v575 = vpop.f32.mrf.mxu0
    %v576 = vadd.f32 %v499, %v575
    %v577 = vpop.f32.mrf.mxu0
    %578 = vdwg.mxu0
    %v579 = vsel %vm315, %v576, -inf
    %580 = vmax.xlane.f32.xlu0 %v579
    %v581 = vpop.xlane.xlu0 %580
    %v582 = vsub.f32 %v576, %v581
    %v583 = vmul.f32 %v582, 1.442695
    %v584 = vpow.pop %v583
    %v585 = vsel %vm315, %v584, 0.0
    %586 = vadd.xlane.f32.xlu0 %v585
    %v587 = vpop.xlane.xlu0 %586
    %v588 = vrcp.pop %v587
    %v589 = vmul.f32 %v584, %v588
    %v590 = vpack.c.bf16 %v589, %v589
    %592 = vrot.lane.b32.xlu0 %v502, 112
    %v593 = vpop.permute.xlu0 %592
    %v595 = vsel %vm315, %v590, 0
    %v598 = vsel %vm331, %v593, 0
    %600 = vmatpush.bf16.msra.mxu0 0
    %601 = vmatpush.bf16.msra.mxu0 0
    %602 = vmatpush.bf16.msra.mxu0 0
    %603 = vmatpush.bf16.msra.mxu0 0
    %604 = vmatpush.bf16.msra.mxu0 0
    %605 = vmatpush.bf16.msra.mxu0 0
    %606 = vmatpush.bf16.msra.mxu0 0
    %607 = vmatpush.bf16.msra.mxu0 %v598
    %608 = vmatmul.bf16.gmra.mxu0 %v595
    %v609 = vpop.f32.mrf.mxu0
    %v610 = vadd.f32 0.0, %v609
    %v611 = vpop.f32.mrf.mxu0
    %612 = vdwg.mxu0
    %v613 = vpack.c.bf16 %v610, %v610
    %v615 = vsel %vm295, %v613, 0
    %617 = vmatpush.bf16.msra.mxu0 0
    %618 = vmatpush.bf16.msra.mxu0 0
    %619 = vmatpush.bf16.msra.mxu0 0
    %620 = vmatpush.bf16.msra.mxu0 0
    %621 = vmatpush.bf16.msra.mxu0 0
    %622 = vmatpush.bf16.msra.mxu0 0
    %623 = vmatpush.bf16.msra.mxu0 0
    %624 = vmatpush.bf16.msra.mxu0 %v413
    %625 = vmatmul.bf16.gmra.mxu0 %v615
    %v626 = vpop.f32.mrf.mxu0
    %v627 = vadd.f32 0.0, %v626
    %v628 = vpop.f32.mrf.mxu0
    %629 = vdwg.mxu0
    %v631 = vsel %vm295, %v553, 0
    %633 = vmatpush.bf16.msra.mxu0 0
    %634 = vmatpush.bf16.msra.mxu0 0
    %635 = vmatpush.bf16.msra.mxu0 0
    %636 = vmatpush.bf16.msra.mxu0 0
    %637 = vmatpush.bf16.msra.mxu0 0
    %638 = vmatpush.bf16.msra.mxu0 0
    %639 = vmatpush.bf16.msra.mxu0 0
    %640 = vmatpush.bf16.msra.mxu0 %v435
    %641 = vmatmul.bf16.gmra.mxu0 %v631
    %v642 = vpop.f32.mrf.mxu0
    %v643 = vadd.f32 %v627, %v642
    %v644 = vpop.f32.mrf.mxu0
    %645 = vdwg.mxu0
    %v646 = vadd.f32 %v643, %v454
    %v647 = vadd.f32 %v646, %v166
    %v648 = vsel %vm184, %v647, 0.0
    %649 = vadd.xlane.f32.xlu0 %v648
    %v650 = vpop.xlane.xlu0 %649
    %v651 = vmul.f32 %v650, %v467
    %v652 = vsub.f32 %v647, %v651
    %v653 = vmul.f32 %v652, %v652
    %v654 = vsel %vm184, %v653, 0.0
    %655 = vadd.xlane.f32.xlu0 %v654
    %v656 = vpop.xlane.xlu0 %655
    %v657 = vmul.f32 %v656, %v467
    %v658 = vadd.f32 %v657, 1e-06
    %v659 = vrsqrt.pop %v658
    %v660 = vmul.f32 %v659, %v658
    %v661 = vmul.f32 %v660, %v659
    %v662 = vmul.f32 0.5, %v661
    %v663 = vsub.f32 1.5, %v662
    %v664 = vmul.f32 %v659, %v663
    %vm665 = vweird.f32 %v658
    %vm666 = vweird.f32 %v659
    %vm667 = vmor %vm665, %vm666
    %v668 = vsel %vm667, %v659, %v664
    %v669 = vmul.f32 %v652, %v668
    %v670 = vmul.f32 %v669, %v488
    %v671 = vadd.f32 %v670, %v492
    %672 = vst.msk [vmem:[#allocation16 + $0x8] sm:$0xff] %vm184, %v671
    // Predicated region
    $region78: #{tpu_custom_call.1} parent=1 // pred_check
      _
    $region79: #{tpu_custom_call.1} parent=1 // pred_check_branch
      %674 = sbr.rel (0) target = $region81
    $region80: #{tpu_custom_call.1} parent=1 // pred_region
      %676 = vsyncadd [#allocation4], 0
      %s677 = sshll.u32 [#allocation16], 4
      %s678 = int_to_ptr.vmem [resolvable:$true] %s677
      %s679 = sshll.u32 %s11, 4
      %s680 = int_to_ptr.hbm [resolvable:$true] %s679
      %685 = dma.vmem_to_hbm [thread:$0]  %s678, 256, %s680, [#allocation4], 128, 128, 8
    $region81: #{tpu_custom_call.1} parent=1 // pred_fallthru
      _
    // Predicated region
    $region82: #{tpu_custom_call.1} parent=1 // pred_check
      _
    $region83: #{tpu_custom_call.1} parent=1 // pred_check_branch
      %687 = sbr.rel (0) target = $region85
    $region84: #{tpu_custom_call.1} parent=1 // pred_region
      %689 = dma.done [#allocation4], 256
    $region85: #{tpu_custom_call.1} parent=1 // pred_fallthru
      _
    %690 = vsyncpa [#allocation3], 1
    %691 = vsyncpa [#allocation6], 1
    %692 = vsyncpa [#allocation9], 1
    %693 = vsyncpa [#allocation12], 1
    %694 = vsyncpa [#allocation15], 1
    %695 = vsyncpa [#allocation4], 1

</llo_original>
